<compile_context>
chip_gen: v6e
topology: v6e:2x2x1
jax: 0.10.0
libtpu: 0.0.40
codegen_flags: <defaults>
</compile_context>

<pallas_src>
import functools
import math

import jax
import jax.numpy as jnp
import numpy as np
from jax.experimental import pallas as pl
from jax.experimental.pallas import tpu as pltpu


def _round_up(x, m):
    return (x + m - 1) // m * m


def _largest_mult128_divisor(n, cap):
    """Largest multiple of 128 that divides n and is <= cap (None if none)."""
    t = min((cap // 128) * 128, (n // 128) * 128)
    while t >= 128:
        if n % t == 0:
            return t
        t -= 128
    return None


# ------------------------------ Pallas kernel ------------------------------

def _equal_linear_kernel(x_ref, w_ref, b_ref, o_ref, acc_ref, *,
                         scale, activate):
    """One (tm, tn) output tile; K is the innermost ("arbitrary") grid axis.

    x:(tm,tk) input dtype   w:(tk,tn) bf16   b:(1,tn) f32 (already * lr_mul)
    o:(tm,tn) out dtype     acc:(tm,tn) f32 VMEM scratch resident across K.
    """
    @pl.when(pl.program_id(2) == 0)
    def _init():
        acc_ref[...] = jnp.zeros_like(acc_ref)

    # In-kernel bf16 cast of x (no-op if x is already bf16); f32 accumulation.
    acc_ref[...] += jnp.dot(x_ref[...].astype(jnp.bfloat16), w_ref[...],
                            preferred_element_type=jnp.float32)

    @pl.when(pl.program_id(2) == pl.num_programs(2) - 1)
    def _epilogue():
        # equalized-lr scale + pre-folded bias fused here (VPU slack).
        out = acc_ref[...] * scale + b_ref[...]
        if activate:  # FusedLeakyReLU
            out = jnp.where(out >= 0.0, out, 0.2 * out) * math.sqrt(2.0)
        o_ref[...] = out.astype(o_ref.dtype)


# ------------------------- one-time param preparation ----------------------

def prepare_equal_linear_params(params, *, lr_mul=1.0):
    """One-time conversion of PyTorch-layout params to the kernel layout.

    Returns a dict with:
      wt_bf16 : (in_dim, n_pad) bf16  pre-transposed weight (N lane-padded once)
      bias_lr : (1, n_pad) f32        bias * lr_mul (zeros if bias is None)
      scale   : python float          1/sqrt(in_dim) * lr_mul   (keep static!)
      in_dim / out_dim : ints
    Call this once per layer and reuse the result across forward calls.
    """
    weight = params["weight"]                         # (out_dim, in_dim)
    out_dim, in_dim = weight.shape
    bias = params.get("bias")
    if bias is None:
        bias = jnp.zeros((out_dim,), jnp.float32)
    n_pad = out_dim if out_dim <= 128 else _round_up(out_dim, 128)
    wt = weight.T.astype(jnp.bfloat16)                # (K, N) one-time relayout
    b = (bias.astype(jnp.float32) * float(lr_mul)).reshape(1, out_dim)
    if n_pad != out_dim:
        wt = jnp.pad(wt, ((0, 0), (0, n_pad - out_dim)))
        b = jnp.pad(b, ((0, 0), (0, n_pad - out_dim)))
    return {
        "wt_bf16": wt,
        "bias_lr": b,
        "scale": float(1.0 / math.sqrt(in_dim) * lr_mul),
        "in_dim": int(in_dim),
        "out_dim": int(out_dim),
    }


# --------------------------------- wrapper ----------------------------------

def equal_linear_forward(params, x, *, lr_mul=1.0, activation=None,
                         out_dtype=None, tm=256, tn=512, tk=2048):
    """EqualLinear forward. x: (..., in_dim) -> (..., out_dim).

    `params` is either the prepared dict from prepare_equal_linear_params()
    (preferred: the weight relayout happens once) or the raw
    {"weight": (out,in), "bias": (out,)} dict (converted here, per call).
    """
    if "wt_bf16" not in params:
        params = prepare_equal_linear_params(params, lr_mul=lr_mul)

    wt = params["wt_bf16"]            # (K, Np) bf16 -- persisted, never copied
    b = params["bias_lr"]             # (1, Np) f32  -- bias * lr_mul
    scale = params["scale"]           # python float (static)
    k = params["in_dim"]
    n = params["out_dim"]
    np_ = wt.shape[1]                 # lane-padded N

    lead = x.shape[:-1]
    m = int(np.prod(lead)) if lead else 1
    a = x.reshape(m, k)               # keep input dtype; bf16 cast is in-kernel
    x_bytes = a.dtype.itemsize
    out_dtype = jnp.dtype(out_dtype) if out_dtype is not None else a.dtype
    o_bytes = out_dtype.itemsize

    # ------------------------ VMEM budget (per generation) ------------------
    try:
        vmem_cap = int(pltpu.get_tpu_info().vmem_capacity_bytes)
    except Exception:
        vmem_cap = 64 << 20           # conservative default (v7x per-TC VMEM)
    budget = (vmem_cap * 3) // 4      # ~48 MiB on v7x, ~96 MiB on v5e/v6e

    # ----------------------------- tile selection ---------------------------
    sub = 8 if x_bytes == 4 else 16               # sublane packing of x tiles
    tm_eff = min(tm, _round_up(m, sub))
    mp = _round_up(m, tm_eff)

    if np_ <= max(tn, 128):
        tn_eff = np_                               # full extent (always legal)
    else:
        tn_eff = _largest_mult128_divisor(np_, tn) or np_

    # v7x has 2 TensorCores sharded over the "parallel" grid axes: make sure
    # there are >= 2 parallel output tiles when the layer is big enough.
    if (mp // tm_eff) * (np_ // tn_eff) == 1 and np_ >= 256:
        tn_eff = _largest_mult128_divisor(np_, np_ // 2) or tn_eff

    # tk: full K when it fits, else a multiple-of-128 divisor of K.
    # -> K is never padded and the weight never copied per call.
    def _k_block_bytes(t):
        return 2 * tm_eff * t * x_bytes + 2 * t * tn_eff * 2
    if k <= tk and _k_block_bytes(k) <= budget // 2:
        tk_eff = k
    else:
        tk_eff = None
        t = min((tk // 128) * 128, (k // 128) * 128)
        while t >= 128:
            if k % t == 0 and _k_block_bytes(t) <= budget // 2:
                tk_eff = t
                break
            t -= 128
        if tk_eff is None:
            tk_eff = k                # rare fallback (prime-ish K): full block

    if mp != m:                       # only x (small M) is ever padded per call
        a = jnp.pad(a, ((0, mp - m), (0, 0)))

    grid = (mp // tm_eff, np_ // tn_eff, k // tk_eff)

    working = (2 * tm_eff * tk_eff * x_bytes       # x double-buffer
               + 2 * tk_eff * tn_eff * 2           # weight double-buffer (bf16)
               + 2 * tn_eff * 4                    # bias
               + 2 * tm_eff * tn_eff * o_bytes     # output double-buffer
               + tm_eff * tn_eff * 4)              # f32 accumulator scratch
    vmem_limit = int(min(max(2 * working, 8 << 20), budget))

    cost = pl.CostEstimate(
        flops=2 * mp * np_ * k,
        transcendentals=0,
        bytes_accessed=(mp * k * x_bytes + k * np_ * 2
                        + np_ * 4 + mp * np_ * o_bytes))

    out = pl.pallas_call(
        functools.partial(_equal_linear_kernel, scale=scale,
                          activate=activation is not None),
        out_shape=jax.ShapeDtypeStruct((mp, np_), out_dtype),
        grid_spec=pltpu.PrefetchScalarGridSpec(
            num_scalar_prefetch=0,
            grid=grid,
            in_specs=[
                pl.BlockSpec((tm_eff, tk_eff), lambda i, j, kk: (i, kk)),
                # If a profile shows exposed weight DMA at large K (esp. v5e),
                # add pipeline_mode=pl.Buffered(3) to this spec.
                pl.BlockSpec((tk_eff, tn_eff), lambda i, j, kk: (kk, j)),
                pl.BlockSpec((1, tn_eff), lambda i, j, kk: (0, j)),
            ],
            out_specs=pl.BlockSpec((tm_eff, tn_eff), lambda i, j, kk: (i, j)),
            scratch_shapes=[pltpu.VMEM((tm_eff, tn_eff), jnp.float32)],
        ),
        compiler_params=pltpu.CompilerParams(
            dimension_semantics=("parallel", "parallel", "arbitrary"),
            vmem_limit_bytes=vmem_limit,
        ),
        cost_estimate=cost,
    )(a, wt, b)

    if (mp, np_) != (m, n):
        out = out[:m, :n]
    return out.reshape(*lead, n)


def init_equal_linear_params(key, in_dim, out_dim, *, lr_mul=1.0, bias=True,
                             bias_init=0.0):
    # PyTorch: weight = randn(out_dim, in_dim) / lr_mul; bias = full(bias_init)
    w = jax.random.normal(key, (out_dim, in_dim), jnp.float32) / lr_mul
    params = {"weight": w}
    if bias:
        params["bias"] = jnp.full((out_dim,), float(bias_init), jnp.float32)
    return params


# ----------------------------- pure-JAX reference ---------------------------

def _ref_forward(params, x, *, lr_mul=1.0, activation=None):
    w = params["weight"]
    scale = (1.0 / math.sqrt(w.shape[1])) * lr_mul
    out = x @ (w * scale).T
    b = params.get("bias")
    if b is not None:
        out = out + b * lr_mul
    if activation is not None:
        out = jnp.where(out >= 0.0, out, 0.2 * out) * math.sqrt(2.0)
    return out


if __name__ == "__main__":
    key = jax.random.PRNGKey(0)
    (k_w1, k_w2, k_w3, k_w4, k_x1, k_x2, k_x3) = jax.random.split(key, 7)

    # Case 1: mapping-network-style layer 32 -> 32, fused_lrelu, lr_mul=0.01.
    p1 = init_equal_linear_params(k_w1, 32, 32, lr_mul=0.01, bias=True,
                                  bias_init=1.0)
    pp1 = prepare_equal_linear_params(p1, lr_mul=0.01)  # one-time relayout
    x1 = jax.random.normal(k_x1, (2, 8, 32), jnp.float32)
    y1 = jax.block_until_ready(
        equal_linear_forward(pp1, x1, activation="fused_lrelu"))
    assert y1.shape == (2, 8, 32), y1.shape
    r1 = _ref_forward(p1, x1, lr_mul=0.01, activation="fused_lrelu")
    # bf16 MXU inputs -> loosened tolerance vs the f32 reference.
    np.testing.assert_allclose(np.asarray(y1), np.asarray(r1),
                               rtol=2e-2, atol=2e-2)

    # Case 2: plain linear branch (no activation), raw-params convenience path.
    p2 = init_equal_linear_params(k_w2, 32, 32, lr_mul=1.0, bias=True,
                                  bias_init=0.25)
    y2 = jax.block_until_ready(
        equal_linear_forward(p2, x1, lr_mul=1.0, activation=None))
    r2 = _ref_forward(p2, x1, lr_mul=1.0, activation=None)
    np.testing.assert_allclose(np.asarray(y2), np.asarray(r2),
                               rtol=2e-2, atol=2e-2)

    # Case 3: multi-step K/N tiled accumulation; K=640 uses a divisor tk
    # (128) so the weight is never padded or copied per call.
    p3 = init_equal_linear_params(k_w3, 640, 384, lr_mul=1.0, bias=True,
                                  bias_init=0.0)
    pp3 = prepare_equal_linear_params(p3, lr_mul=1.0)
    x3 = jax.random.normal(k_x2, (16, 640), jnp.float32)
    y3 = jax.block_until_ready(
        equal_linear_forward(pp3, x3, activation="fused_lrelu",
                             tm=128, tn=128, tk=256))
    assert y3.shape == (16, 384), y3.shape
    r3 = _ref_forward(p3, x3, lr_mul=1.0, activation="fused_lrelu")
    np.testing.assert_allclose(np.asarray(y3), np.asarray(r3),
                               rtol=2e-2, atol=3e-2)

    # Case 4: default (big-tile) schedule, bf16 output writeback, 2 parallel
    # N tiles (keeps both v7x TensorCores busy).
    p4 = init_equal_linear_params(k_w4, 512, 512, lr_mul=1.0, bias=True,
                                  bias_init=0.0)
    pp4 = prepare_equal_linear_params(p4, lr_mul=1.0)
    x4 = jax.random.normal(k_x3, (64, 512), jnp.float32)
    y4 = jax.block_until_ready(
        equal_linear_forward(pp4, x4, activation="fused_lrelu",
                             out_dtype=jnp.bfloat16))
    assert y4.shape == (64, 512) and y4.dtype == jnp.bfloat16
    r4 = _ref_forward(p4, x4, lr_mul=1.0, activation="fused_lrelu")
    np.testing.assert_allclose(np.asarray(y4, dtype=np.float32),
                               np.asarray(r4), rtol=5e-2, atol=5e-2)

    print("KERNEL_OK")
</pallas_src>

<mosaic_0001>
module attributes {stable_mosaic.version = 11 : i64} {
  func.func @_equal_linear_kernel(%arg0: i32, %arg1: i32, %arg2: i32, %arg3: memref<16x32xf32, #tpu.memory_space<vmem>>, %arg4: memref<32x32xbf16, #tpu.memory_space<vmem>>, %arg5: memref<1x32xf32, #tpu.memory_space<vmem>>, %arg6: memref<16x32xf32, #tpu.memory_space<vmem>>, %arg7: memref<16x32xf32, #tpu.memory_space<vmem>>) attributes {dimension_semantics = [#tpu.dimension_semantics<parallel>, #tpu.dimension_semantics<parallel>, #tpu.dimension_semantics<arbitrary>], iteration_bounds = array<i64: 1, 1, 1>, scalar_prefetch = 0 : i64, scratch_operands = 1 : i64, tpu.core_type = #tpu.core_type<tc>, window_params = [{transform_indices = @transform_0, window_bounds = array<i64: 16, 32>}, {transform_indices = @transform_1, window_bounds = array<i64: 32, 32>}, {transform_indices = @transform_2, window_bounds = array<i64: 1, 32>}, {transform_indices = @transform_3, window_bounds = array<i64: 16, 32>}]} {
    %c0_i32 = arith.constant 0 : i32
    %0 = arith.cmpi eq, %arg2, %c0_i32 : i32
    %1 = arith.extui %0 : i1 to i32
    %c0_i32_0 = arith.constant 0 : i32
    %2 = arith.cmpi ne, %1, %c0_i32_0 : i32
    scf.if %2 {
      %cst_10 = arith.constant 0.000000e+00 : f32
      %13 = vector.broadcast %cst_10 : f32 to vector<16x32xf32>
      %c0_11 = arith.constant 0 : index
      %c0_12 = arith.constant 0 : index
      %14 = vector.load %arg7[%c0_11, %c0_12] : memref<16x32xf32, #tpu.memory_space<vmem>>, vector<16x32xf32>
      tpu.vector_store %arg7[%c0_11, %c0_12], %13 {strides = array<i32>} : memref<16x32xf32, #tpu.memory_space<vmem>>, vector<16x32xf32>,
    } else {
    }
    %c0 = arith.constant 0 : index
    %c0_1 = arith.constant 0 : index
    %3 = vector.load %arg7[%c0, %c0_1] : memref<16x32xf32, #tpu.memory_space<vmem>>, vector<16x32xf32>
    %c0_2 = arith.constant 0 : index
    %c0_3 = arith.constant 0 : index
    %4 = vector.load %arg3[%c0_2, %c0_3] : memref<16x32xf32, #tpu.memory_space<vmem>>, vector<16x32xf32>
    %5 = arith.truncf %4 : vector<16x32xf32> to vector<16x32xbf16>
    %c0_4 = arith.constant 0 : index
    %c0_5 = arith.constant 0 : index
    %6 = vector.load %arg4[%c0_4, %c0_5] : memref<32x32xbf16, #tpu.memory_space<vmem>>, vector<32x32xbf16>
    %cst = arith.constant dense<0.000000e+00> : vector<16x32xf32>
    %7 = tpu.matmul %5, %6, %cst {dimension_numbers = #tpu.dot_dimension_numbers<[1], [0], [0], [1], [0, 0, 1, 1], [], []>} : vector<16x32xbf16>, vector<32x32xbf16>, vector<16x32xf32> -> vector<16x32xf32>
    %8 = arith.addf %3, %7 : vector<16x32xf32>
    %c0_6 = arith.constant 0 : index
    %c0_7 = arith.constant 0 : index
    %9 = vector.load %arg7[%c0_6, %c0_7] : memref<16x32xf32, #tpu.memory_space<vmem>>, vector<16x32xf32>
    tpu.vector_store %arg7[%c0_6, %c0_7], %8 {strides = array<i32>} : memref<16x32xf32, #tpu.memory_space<vmem>>, vector<16x32xf32>,
    %c0_i32_8 = arith.constant 0 : i32
    %10 = arith.cmpi eq, %arg2, %c0_i32_8 : i32
    %11 = arith.extui %10 : i1 to i32
    %c0_i32_9 = arith.constant 0 : i32
    %12 = arith.cmpi ne, %11, %c0_i32_9 : i32
    scf.if %12 {
      %c0_10 = arith.constant 0 : index
      %c0_11 = arith.constant 0 : index
      %13 = vector.load %arg7[%c0_10, %c0_11] : memref<16x32xf32, #tpu.memory_space<vmem>>, vector<16x32xf32>
      %cst_12 = arith.constant 0.00176776689 : f32
      %14 = vector.broadcast %cst_12 : f32 to vector<16x32xf32>
      %15 = arith.mulf %13, %14 : vector<16x32xf32>
      %c0_13 = arith.constant 0 : index
      %c0_14 = arith.constant 0 : index
      %16 = vector.load %arg5[%c0_13, %c0_14] : memref<1x32xf32, #tpu.memory_space<vmem>>, vector<1x32xf32>
      %17 = vector.broadcast %16 : vector<1x32xf32> to vector<16x32xf32>
      %18 = arith.addf %15, %17 : vector<16x32xf32>
      %cst_15 = arith.constant 0.000000e+00 : f32
      %19 = vector.broadcast %cst_15 : f32 to vector<16x32xf32>
      %20 = arith.cmpf oge, %18, %19 : vector<16x32xf32>
      %cst_16 = arith.constant 2.000000e-01 : f32
      %21 = vector.broadcast %cst_16 : f32 to vector<16x32xf32>
      %22 = arith.mulf %21, %18 : vector<16x32xf32>
      %23 = arith.select %20, %18, %22 : vector<16x32xi1>, vector<16x32xf32>
      %cst_17 = arith.constant 1.41421354 : f32
      %24 = vector.broadcast %cst_17 : f32 to vector<16x32xf32>
      %25 = arith.mulf %23, %24 : vector<16x32xf32>
      %c0_18 = arith.constant 0 : index
      %c0_19 = arith.constant 0 : index
      %26 = vector.load %arg6[%c0_18, %c0_19] : memref<16x32xf32, #tpu.memory_space<vmem>>, vector<16x32xf32>
      tpu.vector_store %arg6[%c0_18, %c0_19], %25 {strides = array<i32>} : memref<16x32xf32, #tpu.memory_space<vmem>>, vector<16x32xf32>,
    } else {
    }
    return
  }
  func.func @transform_0(%arg0: i32, %arg1: i32, %arg2: i32) -> (i32, i32) {
    %c0_i32 = arith.constant 0 : i32
    return %arg0, %arg2 : i32, i32
  }
  func.func @transform_1(%arg0: i32, %arg1: i32, %arg2: i32) -> (i32, i32) {
    %c0_i32 = arith.constant 0 : i32
    return %arg2, %arg1 : i32, i32
  }
  func.func @transform_2(%arg0: i32, %arg1: i32, %arg2: i32) -> (i32, i32) {
    %c0_i32 = arith.constant 0 : i32
    %c0_i32_0 = arith.constant 0 : i32
    return %c0_i32, %arg1 : i32, i32
  }
  func.func @transform_3(%arg0: i32, %arg1: i32, %arg2: i32) -> (i32, i32) {
    %c0_i32 = arith.constant 0 : i32
    return %arg0, %arg1 : i32, i32
  }
}

</mosaic_0001>

<llo_original>
// kernel: tpu_custom_call.1
$region0: #{tpu_custom_call.1}
  #allocation0 [shape = 'u32[]', space=smem, size = 0x4, offset = 0x4, fixed_abs, tag = 'smem constant byte address 0x4 - core index']
  #allocation1 [shape = 'u32[144,128]{1,0:T(1,128)}', space=vmem, size = 0x12000, scoped, tag = 'internal scratch']
  #allocation2 [shape = 'f32[16,32]{1,0:T(8,128)}', space=vmem, size = 0x2000, scoped, tag = 'scratch operand']
  %s0 = inlined_call_operand.hbm [shape: f32[16,32], index: 0, kind: input, shape index: {}]
  %s1 = inlined_call_operand.hbm [shape: bf16[32,32], index: 1, kind: input, shape index: {}]
  %s2 = inlined_call_operand.vmem [shape: f32[1,32], index: 2, kind: input, shape index: {}]
  %s3 = inlined_call_operand.hbm [shape: f32[16,32], index: 3, kind: output, shape index: {}]
  %s4 = sld [smem:[#allocation0]]
  $region38: #{tpu_custom_call.1} parent=0
    _
  %s6 = ssub.s32 1, %s4
  %s7 = scalar_select 0, %s6, %s4
  $region1: #{tpu_custom_call.1} parent=0
    #allocation3 [shape = 'u8[8192]{0}', space=vmem, size = 0x2000, scoped, tag = 'input window, operand 0, single buffered']
    #allocation4 [shape = 's32[1]{0}', space=sflag, size = 0x4, scoped, tag = 'scoped memory for tpu_custom_call.1']
    #allocation5 [shape = 's32[1]{0}', space=sflag, size = 0x4, scoped, tag = 'scoped memory for tpu_custom_call.1']
    #allocation6 [shape = 'u8[8192]{0}', space=vmem, size = 0x2000, scoped, tag = 'input window, operand 1, single buffered']
    #allocation7 [shape = 's32[1]{0}', space=sflag, size = 0x4, scoped, tag = 'scoped memory for tpu_custom_call.1']
    #allocation8 [shape = 'u8[8192]{0}', space=vmem, size = 0x2000, scoped, tag = 'output window, operand 0, single buffered']
    %8 = vsyncpa [#allocation4], 0
    %9 = vsyncpa [#allocation7], 0
    %10 = vsyncpa [#allocation5], 0
    // Predicated region
    $region2: #{tpu_custom_call.1} parent=1 // pred_check
      _
    $region3: #{tpu_custom_call.1} parent=1 // pred_check_branch
      %12 = sbr.rel (0) target = $region5
    $region4: #{tpu_custom_call.1} parent=1 // pred_region
      %s14 = ssub.s32 256, 256
      %15 = vsyncadd [#allocation4], %s14
      %s16 = sshll.u32 [#allocation3], 4
      %s17 = int_to_ptr.vmem [resolvable:$true] %s16
      %22 = dma.hbm_to_vmem [thread:$0]  %s0, 256, %s17, [#allocation4], 128, 128, 8
    $region5: #{tpu_custom_call.1} parent=1 // pred_fallthru
      _
    // Predicated region
    $region6: #{tpu_custom_call.1} parent=1 // pred_check
      _
    $region7: #{tpu_custom_call.1} parent=1 // pred_check_branch
      %24 = sbr.rel (0) target = $region9
    $region8: #{tpu_custom_call.1} parent=1 // pred_region
      %s26 = ssub.s32 256, 256
      %27 = vsyncadd [#allocation7], %s26
      %s28 = sshll.u32 [#allocation6], 4
      %s29 = int_to_ptr.vmem [resolvable:$true] %s28
      %34 = dma.hbm_to_vmem [thread:$0]  %s1, 256, %s29, [#allocation7], 64, 64, 4
    $region9: #{tpu_custom_call.1} parent=1 // pred_fallthru
      _
    // Predicated region
    $region10: #{tpu_custom_call.1} parent=1 // pred_check
      _
    $region11: #{tpu_custom_call.1} parent=1 // pred_check_branch
      %36 = sbr.rel (0) target = $region13
    $region12: #{tpu_custom_call.1} parent=1 // pred_region
      _
    $region13: #{tpu_custom_call.1} parent=1 // pred_fallthru
      _
    // Predicated region
    $region14: #{tpu_custom_call.1} parent=1 // pred_check
      _
    $region15: #{tpu_custom_call.1} parent=1 // pred_check_branch
      %38 = sbr.rel (0) target = $region17
    $region16: #{tpu_custom_call.1} parent=1 // pred_region
      %39 = dma.done [#allocation4], 256
    $region17: #{tpu_custom_call.1} parent=1 // pred_fallthru
      _
    // Predicated region
    $region18: #{tpu_custom_call.1} parent=1 // pred_check
      _
    $region19: #{tpu_custom_call.1} parent=1 // pred_check_branch
      %41 = sbr.rel (0) target = $region21
    $region20: #{tpu_custom_call.1} parent=1 // pred_region
      %42 = dma.done [#allocation7], 256
    $region21: #{tpu_custom_call.1} parent=1 // pred_fallthru
      _
    %p44 = scmp.eq.s32.totalorder 0, 0
    // Predicated region
    $region22: #{tpu_custom_call.1} parent=1 // pred_check
      %p45 = pneg %p44
    $region23: #{tpu_custom_call.1} parent=1 // pred_check_branch
      %47 = sbr.rel (%p45) target = $region25
    $region24: #{tpu_custom_call.1} parent=1 // pred_region
      %vm48 = vcmask 261120
      %49 = vst.msk [vmem:[#allocation2] sm:$0xff] %vm48, 0.0
      %50 = vst.msk [vmem:[#allocation2 + $0x8] sm:$0xff] %vm48, 0.0
    $region25: #{tpu_custom_call.1} parent=1 // pred_fallthru
      _
    %v51 = vld [vmem:[#allocation2] sm:$0xff]
    %v52 = vld [vmem:[#allocation2 + $0x8] sm:$0xff]
    %v53 = vld [vmem:[#allocation3] sm:$0xff]
    %v54 = vld [vmem:[#allocation3 + $0x8] sm:$0xff]
    %v55 = vpack.c.bf16 %v54, %v53
    %v56 = vld [vmem:[#allocation6] sm:$0xf]
    %v57 = vld [vmem:[#allocation6 + $0x4] sm:$0xf]
    %v58 = vld [vmem:[#allocation6 + $0x8] sm:$0xf]
    %v59 = vld [vmem:[#allocation6 + $0xc] sm:$0xf]
    %v64 = vunpack.c.l.b16 %v56
    %v65 = vunpack.c.l.b16 %v57
    %v66 = vunpack.c.l.b16 %v58
    %v67 = vunpack.c.l.b16 %v59
    %v68 = vpack.c.b16 %v65, %v64
    %v69 = vpack.c.b16 %v67, %v66
    %vm72 = vcmask 261120
    %v74 = vsel %vm72, %v55, 0
    %76 = vmatprep.subr.bf16.mxu0 0
    %77 = vmatpush1.bf16.msra.mxu0 0
    %78 = vmatprep.subr.bf16.mxu0 0
    %79 = vmatpush1.bf16.msra.mxu0 0
    %80 = vmatprep.subr.bf16.mxu0 0
    %81 = vmatpush1.bf16.msra.mxu0 0
    %82 = vmatprep.subr.bf16.mxu0 0
    %83 = vmatpush1.bf16.msra.mxu0 0
    %84 = vmatprep.subr.bf16.mxu0 0
    %85 = vmatpush1.bf16.msra.mxu0 0
    %86 = vmatprep.subr.bf16.mxu0 0
    %87 = vmatpush1.bf16.msra.mxu0 0
    %88 = vmatprep.subr.bf16.mxu0 0
    %89 = vmatpush1.bf16.msra.mxu0 %v69
    %90 = vmatprep.subr.bf16.mxu0 0
    %91 = vmatpush1.bf16.msra.mxu0 %v68
    %92 = vmatprep.subr.bf16.mxu0 0
    %93 = vmatpush2.bf16.msra.mxu0 0
    %94 = vmatprep.subr.bf16.mxu0 0
    %95 = vmatpush2.bf16.msra.mxu0 0
    %96 = vmatprep.subr.bf16.mxu0 0
    %97 = vmatpush2.bf16.msra.mxu0 0
    %98 = vmatprep.subr.bf16.mxu0 0
    %99 = vmatpush2.bf16.msra.mxu0 0
    %100 = vmatprep.subr.bf16.mxu0 0
    %101 = vmatpush2.bf16.msra.mxu0 0
    %102 = vmatprep.subr.bf16.mxu0 0
    %103 = vmatpush2.bf16.msra.mxu0 0
    %104 = vmatprep.subr.bf16.mxu0 0
    %105 = vmatpush2.bf16.msra.mxu0 0
    %106 = vmatprep.subr.bf16.mxu0 0
    %107 = vmatpush2.bf16.msra.mxu0 0
    %108 = vmatprep.mubr.bf16.mxu0 0
    %109 = vmatmul.mubr.bf16.gmra.mxu0 %v74
    %v110 = vpop.f32.mrf.mxu0
    %v111 = vadd.f32 0.0, %v110
    %v112 = vpop.f32.mrf.mxu0
    %v113 = vpop.f32.mrf.mxu0
    %v114 = vadd.f32 0.0, %v113
    %v115 = vpop.f32.mrf.mxu0
    %116 = vdwg.mxu0
    %v117 = vadd.f32 %v51, %v111
    %v118 = vadd.f32 %v52, %v114
    %119 = vst.msk [vmem:[#allocation2] sm:$0xff] %vm72, %v117
    %120 = vst.msk [vmem:[#allocation2 + $0x8] sm:$0xff] %vm72, %v118
    // Predicated region
    $region26: #{tpu_custom_call.1} parent=1 // pred_check
      %p121 = pneg %p44
    $region27: #{tpu_custom_call.1} parent=1 // pred_check_branch
      %123 = sbr.rel (%p121) target = $region29
    $region28: #{tpu_custom_call.1} parent=1 // pred_region
      %v124 = vld [vmem:[#allocation2] sm:$0xff]
      %v125 = vld [vmem:[#allocation2 + $0x8] sm:$0xff]
      %v126 = vmul.f32 %v124, 0.0017677669
      %v127 = vmul.f32 %v125, 0.0017677669
      %v128 = vld [vmem:[%s2] sm:$0x1]
      %v130 = vlaneseq
      %v131 = vshrl.u32 %v130, 7
      %v132 = vsub.s32 0, %v131
      %v133 = vrot.slane %v128, %v132
      %v135 = vadd.f32 %v126, %v133
      %v136 = vadd.f32 %v127, %v133
      %vm137 = vcmp.ge.f32.partialorder %v135, 0.0
      %vm138 = vcmp.ge.f32.partialorder %v136, 0.0
      %v139 = vmul.f32 %v135, 0.2
      %v140 = vmul.f32 %v136, 0.2
      %v141 = vsel %vm137, %v135, %v139
      %v142 = vsel %vm138, %v136, %v140
      %v143 = vmul.f32 %v141, 1.4142135
      %v144 = vmul.f32 %v142, 1.4142135
      %145 = vst.msk [vmem:[#allocation8] sm:$0xff] %vm72, %v143
      %146 = vst.msk [vmem:[#allocation8 + $0x8] sm:$0xff] %vm72, %v144
    $region29: #{tpu_custom_call.1} parent=1 // pred_fallthru
      _
    // Predicated region
    $region30: #{tpu_custom_call.1} parent=1 // pred_check
      _
    $region31: #{tpu_custom_call.1} parent=1 // pred_check_branch
      %148 = sbr.rel (0) target = $region33
    $region32: #{tpu_custom_call.1} parent=1 // pred_region
      %s150 = ssub.s32 256, 256
      %151 = vsyncadd [#allocation5], %s150
      %s152 = sshll.u32 [#allocation8], 4
      %s153 = int_to_ptr.vmem [resolvable:$true] %s152
      %158 = dma.vmem_to_hbm [thread:$0]  %s153, 256, %s3, [#allocation5], 128, 128, 8
    $region33: #{tpu_custom_call.1} parent=1 // pred_fallthru
      _
    // Predicated region
    $region34: #{tpu_custom_call.1} parent=1 // pred_check
      _
    $region35: #{tpu_custom_call.1} parent=1 // pred_check_branch
      %160 = sbr.rel (0) target = $region37
    $region36: #{tpu_custom_call.1} parent=1 // pred_region
      %161 = dma.done [#allocation5], 256
    $region37: #{tpu_custom_call.1} parent=1 // pred_fallthru
      _
    %162 = vsyncpa [#allocation4], 1
    %163 = vsyncpa [#allocation7], 1
    %164 = vsyncpa [#allocation5], 1

</llo_original>
